<compile_context>
chip_gen: v6e
topology: v6e:2x2x1
jax: 0.10.0
libtpu: 0.0.40
codegen_flags: <defaults>
</compile_context>

<pallas_src>
import functools

import jax
import jax.numpy as jnp
from jax.experimental import pallas as pl
from jax.experimental.pallas import tpu as pltpu


def _round_up(x, m):
    return -(-x // m) * m


def _device_kind():
    try:
        return jax.devices()[0].device_kind.lower()
    except Exception:  # pragma: no cover - defensive
        return ""


def _is_v7():
    return "v7" in _device_kind()


def _neigh_sum_dtype():
    # v6e / v7x have bf16 VPU adds -> sum the K neighbor slabs in bf16.
    # v5e (and unknown chips) keep f32 accumulation (no bf16 VPU there).
    kind = _device_kind()
    if ("v6" in kind) or ("v7" in kind):
        return jnp.bfloat16
    return jnp.float32


def _vmem_tile_budget_bytes():
    # Conservative working-set budget used to pick tile_m.
    # v7x: 64 MiB physical / 32 MiB scoped default -> budget 24 MiB.
    # v5e / v6e: 128 MiB physical -> budget 48 MiB.
    return (24 << 20) if _is_v7() else (48 << 20)


def _vmem_limit_bytes():
    # Explicit scoped-VMEM limit handed to the compiler (headroom over budget).
    return (32 << 20) if _is_v7() else (64 << 20)


def _pick_tile_m(M, D_in, D_h, K, out_bytes, max_tile):
    """Largest lane tile (multiple of 128) that fits the VMEM budget."""
    budget = _vmem_tile_budget_bytes()
    per_col = (
        2 * (K + 1) * D_in * 2      # double-buffered bf16 src + neigh tiles
        + 2 * D_h * out_bytes       # double-buffered output tile
        + 8 * D_in + 4 * D_h        # in-kernel temporaries (aggr/stacked/h)
    )
    fixed = 2 * (2 * D_in) * D_h * 2  # (double-buffered) bf16 weight tile
    avail = max(budget - fixed, per_col * 128)
    tile_m = min(max_tile, (avail // per_col) // 128 * 128)
    tile_m = max(tile_m, 128)
    tile_m = min(tile_m, _round_up(max(M, 1), 128))
    if _is_v7() and M > 128:
        # Keep >= 2 node tiles so the grid can split across v7x's 2 TensorCores.
        tile_m = min(tile_m, _round_up(-(-M // 2), 128))
    return tile_m


# ---------------------------------------------------------------------------
# Pallas kernel: one SageGCN layer applied to a lane-dense tile of nodes
# ---------------------------------------------------------------------------
def _sage_gcn_kernel(src_t_ref, neigh_t_ref, w_t_ref, out_ref, *,
                     inv_k, apply_relu, sum_dtype):
    # src_t:   (D_in, TM)     bf16  -- node axis on lanes
    # neigh_t: (K, D_in, TM)  bf16
    # w_t:     (D_h, 2*D_in)  bf16  -- [w_self; w_agg]^T (un-scaled)
    # out:     (D_h, TM)      bf16 (hidden layers) / f32 (last layer)
    #
    # Neighbor 'mean' aggregation: sum over K (VPU) then a scalar 1/K mul.
    # Accumulation dtype is bf16 on v6e/v7x and f32 on v5e.
    aggr = jnp.sum(neigh_t_ref[...].astype(sum_dtype), axis=0) * inv_k
    stacked = jnp.concatenate(
        [src_t_ref[...], aggr.astype(jnp.bfloat16)], axis=0)    # (2*D_in, TM)
    h_t = jnp.dot(w_t_ref[...], stacked,
                  preferred_element_type=jnp.float32)           # (D_h, TM) f32
    if apply_relu:                                               # F.relu
        h_t = jnp.maximum(h_t, 0.0)
    out_ref[...] = h_t.astype(out_ref.dtype)


def sage_gcn_lane_dense(src_t, neigh_t, w_self, w_agg, *, apply_relu,
                        out_dtype=jnp.bfloat16, max_tile=1024):
    """One SageGCN forward over lane-dense (feature, node) inputs.

    src_t:   (D_in, M)     bf16
    neigh_t: (K, D_in, M)  bf16
    returns  (D_h, M)      out_dtype, lane-dense
    """
    D_in, M = src_t.shape
    K = neigh_t.shape[0]
    D_h = w_self.shape[1]

    # Fused [self ; aggregator] weight, transposed for the (D_h, node) output.
    # 1/K is applied inside the kernel so the bf16 weights are not re-rounded
    # by the scale fold.
    w_t = jnp.concatenate([w_self, w_agg], axis=0).T.astype(jnp.bfloat16)

    out_bytes = jnp.dtype(out_dtype).itemsize
    tile_m = _pick_tile_m(M, D_in, D_h, K, out_bytes, max_tile)
    m_pad = _round_up(M, tile_m)

    if m_pad != M:  # zero padding along lanes only; sliced off below (benign)
        src_t = jnp.pad(src_t, ((0, 0), (0, m_pad - M)))
        neigh_t = jnp.pad(neigh_t, ((0, 0), (0, 0), (0, m_pad - M)))

    grid = (m_pad // tile_m,)
    kernel = functools.partial(_sage_gcn_kernel, inv_k=1.0 / K,
                               apply_relu=apply_relu,
                               sum_dtype=_neigh_sum_dtype())

    flops = 2 * m_pad * (2 * D_in) * D_h + m_pad * K * D_in
    bytes_accessed = (src_t.size + neigh_t.size + w_t.size) * 2 \
        + m_pad * D_h * out_bytes

    out_t = pl.pallas_call(
        kernel,
        out_shape=jax.ShapeDtypeStruct((D_h, m_pad), out_dtype),
        grid_spec=pltpu.PrefetchScalarGridSpec(
            num_scalar_prefetch=0,
            grid=grid,
            in_specs=[
                pl.BlockSpec((D_in, tile_m), lambda i: (0, i)),
                pl.BlockSpec((K, D_in, tile_m), lambda i: (0, 0, i)),
                pl.BlockSpec((D_h, 2 * D_in), lambda i: (0, 0)),
            ],
            out_specs=pl.BlockSpec((D_h, tile_m), lambda i: (0, i)),
        ),
        compiler_params=pltpu.CompilerParams(
            dimension_semantics=("parallel",),
            vmem_limit_bytes=_vmem_limit_bytes()),
        cost_estimate=pl.CostEstimate(
            flops=flops, transcendentals=0, bytes_accessed=bytes_accessed),
    )(src_t, neigh_t, w_t)

    return out_t[:, :M]                                       # (D_h, M)


# ---------------------------------------------------------------------------
# GraphSage forward (plain-JAX glue around the Pallas SageGCN kernel)
# ---------------------------------------------------------------------------
def graphsage_forward(node_features_list, params, num_neighbors_list):
    """params[l] = (w_self, w_agg, apply_relu) for layer l."""
    num_layers = len(num_neighbors_list)
    # One-time move into the kernel layout: features on sublanes, nodes on
    # lanes, bf16.  All intermediate activations stay in this layout.
    hidden_t = [x.T.astype(jnp.bfloat16) for x in node_features_list]

    for l in range(num_layers):
        w_self, w_agg, apply_relu = params[l]
        out_dtype = jnp.float32 if l == num_layers - 1 else jnp.bfloat16
        n_hops = num_layers - l
        ks = [num_neighbors_list[h] for h in range(n_hops)]

        srcs_t = [hidden_t[h] for h in range(n_hops)]
        # Per-hop neighbor view, already bf16 and lane-dense: (K, D_in, N_h).
        # (This transpose is now the only wrapper-side pass over the neighbor
        #  tensor; a scalar-prefetch offset table could remove it entirely.)
        neighs_t = []
        for h in range(n_hops):
            d_in, n_src = srcs_t[h].shape
            neighs_t.append(
                hidden_t[h + 1].reshape(d_in, n_src, ks[h]).transpose(2, 0, 1))

        if len(set(ks)) == 1:
            # Batch every hop of this layer into a single pallas_call.
            src_all = srcs_t[0] if n_hops == 1 else jnp.concatenate(srcs_t, axis=1)
            neigh_all = (neighs_t[0] if n_hops == 1
                         else jnp.concatenate(neighs_t, axis=2))
            out_all = sage_gcn_lane_dense(src_all, neigh_all, w_self, w_agg,
                                          apply_relu=apply_relu,
                                          out_dtype=out_dtype)
            offs = [0]
            for s in srcs_t:
                offs.append(offs[-1] + s.shape[1])
            hidden_t = [out_all[:, offs[i]:offs[i + 1]] for i in range(n_hops)]
        else:
            # Non-uniform K across hops: fall back to one call per hop.
            hidden_t = [sage_gcn_lane_dense(srcs_t[h], neighs_t[h], w_self,
                                            w_agg, apply_relu=apply_relu,
                                            out_dtype=out_dtype)
                        for h in range(n_hops)]

    return hidden_t[0].T          # (M, D_out) f32, transposed once at the end


def graphsage_reference(node_features_list, params, num_neighbors_list):
    """Pure-JAX f32 reference matching the PyTorch module."""
    hidden = list(node_features_list)
    num_layers = len(num_neighbors_list)
    for l in range(num_layers):
        w_self, w_agg, apply_relu = params[l]
        next_hidden = []
        for hop in range(num_layers - l):
            src = hidden[hop]
            n = src.shape[0]
            neigh = hidden[hop + 1].reshape(n, num_neighbors_list[hop], -1)
            h = src @ w_self + jnp.mean(neigh, axis=1) @ w_agg
            if apply_relu:
                h = jnp.maximum(h, 0.0)
            next_hidden.append(h)
        hidden = next_hidden
    return hidden[0]


def _kaiming_uniform(key, shape):
    # mimic torch.nn.init.kaiming_uniform_ (a=0): bound = sqrt(2)*sqrt(3/fan_in)
    fan_in = shape[1]  # torch fan_in for a 2-D (in, out) tensor is size(1)
    bound = jnp.sqrt(6.0 / fan_in)
    return jax.random.uniform(key, shape, jnp.float32, -bound, bound)


def init_params(key, input_dim, hidden_dim):
    """GraphSage: all SageGCN layers use ReLU except the last (activation=None)."""
    dims = [input_dim] + list(hidden_dim)
    params = []
    num_layers = len(hidden_dim)
    for l in range(num_layers):
        key, k1, k2 = jax.random.split(key, 3)
        w_self = _kaiming_uniform(k1, (dims[l], dims[l + 1]))
        w_agg = _kaiming_uniform(k2, (dims[l], dims[l + 1]))
        apply_relu = (l != num_layers - 1)
        params.append((w_self, w_agg, apply_relu))
    return params


if __name__ == "__main__":
    # Small, module-consistent shapes:
    #   2-layer GraphSage, hidden_dim=[32, 16], 10 neighbors per hop,
    #   8 target nodes, input feature dim 16.
    input_dim = 16
    hidden_dim = [32, 16]
    num_neighbors_list = [10, 10]
    n_src = 8

    key = jax.random.PRNGKey(0)
    key, kp, k0, k1, k2 = jax.random.split(key, 5)
    params = init_params(kp, input_dim, hidden_dim)

    # node_features_list: [src feats, hop-1 neighbor feats, hop-2 neighbor feats]
    x0 = jax.random.normal(k0, (n_src, input_dim), jnp.float32)
    x1 = jax.random.normal(
        k1, (n_src * num_neighbors_list[0], input_dim), jnp.float32)
    x2 = jax.random.normal(
        k2, (n_src * num_neighbors_list[0] * num_neighbors_list[1], input_dim),
        jnp.float32)
    feats = [x0, x1, x2]

    out = graphsage_forward(feats, params, num_neighbors_list)
    jax.block_until_ready(out)
    assert out.shape == (n_src, hidden_dim[-1])

    # Loose tolerance: bf16 traffic + bf16 intermediate activations.
    ref = graphsage_reference(feats, params, num_neighbors_list)
    assert jnp.allclose(out, ref, rtol=5e-2, atol=1e-1), (
        "kernel output diverges from reference")

    print("KERNEL_OK")
</pallas_src>

<mosaic_0001>
module attributes {stable_mosaic.version = 11 : i64} {
  func.func @_sage_gcn_kernel(%arg0: i32, %arg1: memref<16x128xbf16, #tpu.memory_space<vmem>>, %arg2: memref<10x16x128xbf16, #tpu.memory_space<vmem>>, %arg3: memref<32x32xbf16, #tpu.memory_space<vmem>>, %arg4: memref<32x128xbf16, #tpu.memory_space<vmem>>) attributes {dimension_semantics = [#tpu.dimension_semantics<parallel>], iteration_bounds = array<i64: 1>, scalar_prefetch = 0 : i64, scratch_operands = 0 : i64, tpu.core_type = #tpu.core_type<tc>, window_params = [{transform_indices = @transform_0, window_bounds = array<i64: 16, 128>}, {transform_indices = @transform_1, window_bounds = array<i64: 10, 16, 128>}, {pipeline_mode = #tpu.pipeline_mode<synchronous>, transform_indices = @transform_2, window_bounds = array<i64: 32, 32>}, {transform_indices = @transform_3, window_bounds = array<i64: 32, 128>}]} {
    %c0 = arith.constant 0 : index
    %c0_0 = arith.constant 0 : index
    %c0_1 = arith.constant 0 : index
    %0 = vector.load %arg2[%c0, %c0_0, %c0_1] : memref<10x16x128xbf16, #tpu.memory_space<vmem>>, vector<10x16x128xbf16>
    %1 = arith.extf %0 : vector<10x16x128xbf16> to vector<10x16x128xf32>
    %cst = arith.constant dense<0.000000e+00> : vector<16x128xf32>
    %2 = vector.multi_reduction <add>, %1, %cst [0] : vector<10x16x128xf32> to vector<16x128xf32>
    %cst_2 = arith.constant 1.000000e-01 : f32
    %3 = vector.broadcast %cst_2 : f32 to vector<16x128xf32>
    %4 = arith.mulf %2, %3 : vector<16x128xf32>
    %c0_3 = arith.constant 0 : index
    %c0_4 = arith.constant 0 : index
    %5 = vector.load %arg1[%c0_3, %c0_4] : memref<16x128xbf16, #tpu.memory_space<vmem>>, vector<16x128xbf16>
    %6 = arith.truncf %4 : vector<16x128xf32> to vector<16x128xbf16>
    %7 = tpu.concatenate %5, %6 in 0 : vector<16x128xbf16>, vector<16x128xbf16> -> vector<32x128xbf16>
    %c0_5 = arith.constant 0 : index
    %c0_6 = arith.constant 0 : index
    %8 = vector.load %arg3[%c0_5, %c0_6] : memref<32x32xbf16, #tpu.memory_space<vmem>>, vector<32x32xbf16>
    %cst_7 = arith.constant dense<0.000000e+00> : vector<32x128xf32>
    %9 = tpu.matmul %8, %7, %cst_7 {dimension_numbers = #tpu.dot_dimension_numbers<[1], [0], [0], [1], [0, 0, 1, 1], [], []>} : vector<32x32xbf16>, vector<32x128xbf16>, vector<32x128xf32> -> vector<32x128xf32>
    %cst_8 = arith.constant 0.000000e+00 : f32
    %10 = vector.broadcast %cst_8 : f32 to vector<32x128xf32>
    %11 = arith.maximumf %9, %10 : vector<32x128xf32>
    %12 = arith.truncf %11 : vector<32x128xf32> to vector<32x128xbf16>
    %c0_9 = arith.constant 0 : index
    %c0_10 = arith.constant 0 : index
    %13 = vector.load %arg4[%c0_9, %c0_10] : memref<32x128xbf16, #tpu.memory_space<vmem>>, vector<32x128xbf16>
    tpu.vector_store %arg4[%c0_9, %c0_10], %12 {strides = array<i32>} : memref<32x128xbf16, #tpu.memory_space<vmem>>, vector<32x128xbf16>,
    return
  }
  func.func @transform_0(%arg0: i32) -> (i32, i32) {
    %c0_i32 = arith.constant 0 : i32
    %c0_i32_0 = arith.constant 0 : i32
    return %c0_i32, %arg0 : i32, i32
  }
  func.func @transform_1(%arg0: i32) -> (i32, i32, i32) {
    %c0_i32 = arith.constant 0 : i32
    %c0_i32_0 = arith.constant 0 : i32
    %c0_i32_1 = arith.constant 0 : i32
    return %c0_i32, %c0_i32_0, %arg0 : i32, i32, i32
  }
  func.func @transform_2(%arg0: i32) -> (i32, i32) {
    %c0_i32 = arith.constant 0 : i32
    %c0_i32_0 = arith.constant 0 : i32
    %c0_i32_1 = arith.constant 0 : i32
    return %c0_i32, %c0_i32_0 : i32, i32
  }
  func.func @transform_3(%arg0: i32) -> (i32, i32) {
    %c0_i32 = arith.constant 0 : i32
    %c0_i32_0 = arith.constant 0 : i32
    return %c0_i32, %arg0 : i32, i32
  }
}

</mosaic_0001>

<llo_original>
// kernel: tpu_custom_call.1
$region0: #{tpu_custom_call.1}
  #allocation0 [shape = 'u32[]', space=smem, size = 0x4, offset = 0x4, fixed_abs, tag = 'smem constant byte address 0x4 - core index']
  #allocation1 [shape = 'u32[144,128]{1,0:T(1,128)}', space=vmem, size = 0x12000, scoped, tag = 'internal scratch']
  %s0 = inlined_call_operand.hbm [shape: bf16[16,128], index: 0, kind: input, shape index: {}]
  %s1 = inlined_call_operand.hbm [shape: bf16[10,16,128], index: 1, kind: input, shape index: {}]
  %s2 = inlined_call_operand.hbm [shape: bf16[32,32], index: 2, kind: input, shape index: {}]
  %s3 = inlined_call_operand.hbm [shape: bf16[32,128], index: 3, kind: output, shape index: {}]
  %s4 = sld [smem:[#allocation0]]
  $region34: #{tpu_custom_call.1} parent=0
    _
  %s6 = ssub.s32 1, %s4
  %s7 = scalar_select 0, %s6, %s4
  $region1: #{tpu_custom_call.1} parent=0
    #allocation2 [shape = 'u8[4096]{0}', space=vmem, size = 0x1000, scoped, tag = 'input window, operand 0, single buffered']
    #allocation3 [shape = 's32[1]{0}', space=sflag, size = 0x4, scoped, tag = 'scoped memory for tpu_custom_call.1']
    #allocation4 [shape = 's32[1]{0}', space=sflag, size = 0x4, scoped, tag = 'scoped memory for tpu_custom_call.1']
    #allocation5 [shape = 'u8[40960]{0}', space=vmem, size = 0xa000, scoped, tag = 'input window, operand 1, single buffered']
    #allocation6 [shape = 's32[1]{0}', space=sflag, size = 0x4, scoped, tag = 'scoped memory for tpu_custom_call.1']
    #allocation7 [shape = 'u8[8192]{0}', space=vmem, size = 0x2000, scoped, tag = 'input window, operand 2, single buffered']
    #allocation8 [shape = 'u8[8192]{0}', space=vmem, size = 0x2000, scoped, tag = 'output window, operand 0, single buffered']
    %8 = vsyncpa [#allocation3], 0
    %9 = vsyncpa [#allocation6], 0
    %10 = vsyncpa [#allocation4], 0
    // Predicated region
    $region2: #{tpu_custom_call.1} parent=1 // pred_check
      _
    $region3: #{tpu_custom_call.1} parent=1 // pred_check_branch
      %12 = sbr.rel (0) target = $region5
    $region4: #{tpu_custom_call.1} parent=1 // pred_region
      %s14 = ssub.s32 128, 128
      %15 = vsyncadd [#allocation3], %s14
      %s16 = sshll.u32 [#allocation2], 4
      %s17 = int_to_ptr.vmem [resolvable:$true] %s16
      %22 = dma.hbm_to_vmem [thread:$0]  %s0, 128, %s17, [#allocation3], 64, 64, 4
    $region5: #{tpu_custom_call.1} parent=1 // pred_fallthru
      _
    // Predicated region
    $region6: #{tpu_custom_call.1} parent=1 // pred_check
      _
    $region7: #{tpu_custom_call.1} parent=1 // pred_check_branch
      %24 = sbr.rel (0) target = $region9
    $region8: #{tpu_custom_call.1} parent=1 // pred_region
      %s26 = ssub.s32 1280, 1280
      %27 = vsyncadd [#allocation6], %s26
      %s28 = sshll.u32 [#allocation5], 4
      %s29 = int_to_ptr.vmem [resolvable:$true] %s28
      %34 = dma.hbm_to_vmem [thread:$0]  %s1, 1280, %s29, [#allocation6], 64, 64, 4
    $region9: #{tpu_custom_call.1} parent=1 // pred_fallthru
      _
    // Predicated region
    $region10: #{tpu_custom_call.1} parent=1 // pred_check
      _
    $region11: #{tpu_custom_call.1} parent=1 // pred_check_branch
      %36 = sbr.rel (0) target = $region13
    $region12: #{tpu_custom_call.1} parent=1 // pred_region
      %s38 = ssub.s32 256, 256
      %39 = vsyncadd [#allocation6], %s38
      %s40 = sshll.u32 [#allocation7], 4
      %s41 = int_to_ptr.vmem [resolvable:$true] %s40
      %46 = dma.hbm_to_vmem [thread:$0]  %s2, 256, %s41, [#allocation6], 64, 64, 4
    $region13: #{tpu_custom_call.1} parent=1 // pred_fallthru
      _
    // Predicated region
    $region14: #{tpu_custom_call.1} parent=1 // pred_check
      _
    $region15: #{tpu_custom_call.1} parent=1 // pred_check_branch
      %48 = sbr.rel (0) target = $region17
    $region16: #{tpu_custom_call.1} parent=1 // pred_region
      %49 = dma.done [#allocation3], 128
    $region17: #{tpu_custom_call.1} parent=1 // pred_fallthru
      _
    // Predicated region
    $region18: #{tpu_custom_call.1} parent=1 // pred_check
      _
    $region19: #{tpu_custom_call.1} parent=1 // pred_check_branch
      %51 = sbr.rel (0) target = $region21
    $region20: #{tpu_custom_call.1} parent=1 // pred_region
      %52 = dma.done [#allocation6], 1280
    $region21: #{tpu_custom_call.1} parent=1 // pred_fallthru
      _
    // Predicated region
    $region22: #{tpu_custom_call.1} parent=1 // pred_check
      _
    $region23: #{tpu_custom_call.1} parent=1 // pred_check_branch
      %54 = sbr.rel (0) target = $region25
    $region24: #{tpu_custom_call.1} parent=1 // pred_region
      %55 = dma.done [#allocation6], 256
    $region25: #{tpu_custom_call.1} parent=1 // pred_fallthru
      _
    %v57 = vld [vmem:[#allocation5] sm:$0xf]
    %v58 = vld [vmem:[#allocation5 + $0x4] sm:$0xf]
    %v59 = vld [vmem:[#allocation5 + $0x8] sm:$0xf]
    %v60 = vld [vmem:[#allocation5 + $0xc] sm:$0xf]
    %v61 = vld [vmem:[#allocation5 + $0x10] sm:$0xf]
    %v62 = vld [vmem:[#allocation5 + $0x14] sm:$0xf]
    %v63 = vld [vmem:[#allocation5 + $0x18] sm:$0xf]
    %v64 = vld [vmem:[#allocation5 + $0x1c] sm:$0xf]
    %v65 = vld [vmem:[#allocation5 + $0x20] sm:$0xf]
    %v66 = vld [vmem:[#allocation5 + $0x24] sm:$0xf]
    %v67 = vld [vmem:[#allocation5 + $0x28] sm:$0xf]
    %v68 = vld [vmem:[#allocation5 + $0x2c] sm:$0xf]
    %v69 = vld [vmem:[#allocation5 + $0x30] sm:$0xf]
    %v70 = vld [vmem:[#allocation5 + $0x34] sm:$0xf]
    %v71 = vld [vmem:[#allocation5 + $0x38] sm:$0xf]
    %v72 = vld [vmem:[#allocation5 + $0x3c] sm:$0xf]
    %v73 = vld [vmem:[#allocation5 + $0x40] sm:$0xf]
    %v74 = vld [vmem:[#allocation5 + $0x44] sm:$0xf]
    %v75 = vld [vmem:[#allocation5 + $0x48] sm:$0xf]
    %v76 = vld [vmem:[#allocation5 + $0x4c] sm:$0xf]
    %v77 = vunpack.c.l.bf16 %v57
    %v78 = vunpack.c.l.bf16 %v58
    %v79 = vunpack.c.l.bf16 %v59
    %v80 = vunpack.c.l.bf16 %v60
    %v81 = vunpack.c.l.bf16 %v61
    %v82 = vunpack.c.l.bf16 %v62
    %v83 = vunpack.c.l.bf16 %v63
    %v84 = vunpack.c.l.bf16 %v64
    %v85 = vunpack.c.l.bf16 %v65
    %v86 = vunpack.c.l.bf16 %v66
    %v87 = vunpack.c.l.bf16 %v67
    %v88 = vunpack.c.l.bf16 %v68
    %v89 = vunpack.c.l.bf16 %v69
    %v90 = vunpack.c.l.bf16 %v70
    %v91 = vunpack.c.l.bf16 %v71
    %v92 = vunpack.c.l.bf16 %v72
    %v93 = vunpack.c.l.bf16 %v73
    %v94 = vunpack.c.l.bf16 %v74
    %v95 = vunpack.c.l.bf16 %v75
    %v96 = vunpack.c.l.bf16 %v76
    %v97 = vadd.f32 %v77, %v79
    %v98 = vadd.f32 %v97, %v81
    %v99 = vadd.f32 %v98, %v83
    %v100 = vadd.f32 %v99, %v85
    %v101 = vadd.f32 %v100, %v87
    %v102 = vadd.f32 %v101, %v89
    %v103 = vadd.f32 %v102, %v91
    %v104 = vadd.f32 %v103, %v93
    %v105 = vadd.f32 %v104, %v95
    %v106 = vadd.f32 %v78, %v80
    %v107 = vadd.f32 %v106, %v82
    %v108 = vadd.f32 %v107, %v84
    %v109 = vadd.f32 %v108, %v86
    %v110 = vadd.f32 %v109, %v88
    %v111 = vadd.f32 %v110, %v90
    %v112 = vadd.f32 %v111, %v92
    %v113 = vadd.f32 %v112, %v94
    %v114 = vadd.f32 %v113, %v96
    %v115 = vmul.f32 %v105, 0.1
    %v116 = vmul.f32 %v114, 0.1
    %v117 = vld [vmem:[#allocation2] sm:$0xf]
    %v118 = vld [vmem:[#allocation2 + $0x4] sm:$0xf]
    %v119 = vpack.c.bf16 %v116, %v115
    %v122 = vunpack.c.l.b16 %v117
    %v123 = vunpack.c.l.b16 %v118
    %v124 = vpack.c.b16 %v123, %v122
    %v126 = vld [vmem:[#allocation7] sm:$0xf]
    %v127 = vld [vmem:[#allocation7 + $0x4] sm:$0xf]
    %v128 = vld [vmem:[#allocation7 + $0x8] sm:$0xf]
    %v129 = vld [vmem:[#allocation7 + $0xc] sm:$0xf]
    %v134 = vunpack.c.l.b16 %v126
    %v135 = vunpack.c.l.b16 %v127
    %v136 = vunpack.c.l.b16 %v128
    %v137 = vunpack.c.l.b16 %v129
    %v138 = vpack.c.b16 %v135, %v134
    %v139 = vpack.c.b16 %v137, %v136
    %vm140 = vcmask 261120
    %v142 = vsel %vm140, %v138, 0
    %v145 = vsel %vm140, %v139, 0
    %147 = vmatprep.subr.bf16.mxu0 0
    %148 = vmatpush1.bf16.msra.mxu0 0
    %149 = vmatprep.subr.bf16.mxu0 0
    %150 = vmatpush1.bf16.msra.mxu0 0
    %151 = vmatprep.subr.bf16.mxu0 0
    %152 = vmatpush1.bf16.msra.mxu0 0
    %153 = vmatprep.subr.bf16.mxu0 0
    %154 = vmatpush1.bf16.msra.mxu0 0
    %155 = vmatprep.subr.bf16.mxu0 0
    %156 = vmatpush1.bf16.msra.mxu0 0
    %157 = vmatprep.subr.bf16.mxu0 0
    %158 = vmatpush1.bf16.msra.mxu0 0
    %159 = vmatprep.subr.bf16.mxu0 0
    %160 = vmatpush1.bf16.msra.mxu0 %v119
    %161 = vmatprep.subr.bf16.mxu0 0
    %162 = vmatpush1.bf16.msra.mxu0 %v124
    %163 = vmatprep.subr.bf16.mxu0 0
    %164 = vmatpush2.bf16.msra.mxu0 0
    %165 = vmatprep.subr.bf16.mxu0 0
    %166 = vmatpush2.bf16.msra.mxu0 0
    %167 = vmatprep.subr.bf16.mxu0 0
    %168 = vmatpush2.bf16.msra.mxu0 0
    %169 = vmatprep.subr.bf16.mxu0 0
    %170 = vmatpush2.bf16.msra.mxu0 0
    %171 = vmatprep.subr.bf16.mxu0 0
    %172 = vmatpush2.bf16.msra.mxu0 0
    %173 = vmatprep.subr.bf16.mxu0 0
    %174 = vmatpush2.bf16.msra.mxu0 0
    %175 = vmatprep.subr.bf16.mxu0 0
    %176 = vmatpush2.bf16.msra.mxu0 0
    %177 = vmatprep.subr.bf16.mxu0 0
    %178 = vmatpush2.bf16.msra.mxu0 0
    %179 = vmatprep.mubr.bf16.mxu0 0
    %180 = vmatmul.mubr.bf16.gmra.mxu0 %v142
    %v181 = vpop.f32.mrf.mxu0
    %v182 = vadd.f32 0.0, %v181
    %v183 = vpop.f32.mrf.mxu0
    %v184 = vpop.f32.mrf.mxu0
    %v185 = vadd.f32 0.0, %v184
    %v186 = vpop.f32.mrf.mxu0
    %187 = vmatprep.mubr.bf16.mxu0 0
    %188 = vmatmul.mubr.bf16.gmra.mxu0 %v145
    %v189 = vpop.f32.mrf.mxu0
    %v190 = vadd.f32 0.0, %v189
    %v191 = vpop.f32.mrf.mxu0
    %v192 = vpop.f32.mrf.mxu0
    %v193 = vadd.f32 0.0, %v192
    %v194 = vpop.f32.mrf.mxu0
    %195 = vdwg.mxu0
    %v196 = vmax.f32 %v182, 0.0
    %v197 = vmax.f32 %v185, 0.0
    %v198 = vmax.f32 %v190, 0.0
    %v199 = vmax.f32 %v193, 0.0
    %v200 = vpack.c.bf16 %v197, %v196
    %v201 = vpack.c.bf16 %v199, %v198
    %v204 = vunpack.c.l.b16 %v200
    %v205 = vunpack.c.h.b16 %v200
    %v206 = vunpack.c.l.b16 %v201
    %v207 = vunpack.c.h.b16 %v201
    %v208 = vpack.c.b16 %v204, %v204
    %v209 = vpack.c.b16 %v205, %v205
    %v210 = vpack.c.b16 %v206, %v206
    %v211 = vpack.c.b16 %v207, %v207
    %216 = vst [vmem:[#allocation8] sm:$0xf] %v208
    %217 = vst [vmem:[#allocation8 + $0x4] sm:$0xf] %v209
    %218 = vst [vmem:[#allocation8 + $0x8] sm:$0xf] %v210
    %219 = vst [vmem:[#allocation8 + $0xc] sm:$0xf] %v211
    // Predicated region
    $region26: #{tpu_custom_call.1} parent=1 // pred_check
      _
    $region27: #{tpu_custom_call.1} parent=1 // pred_check_branch
      %221 = sbr.rel (0) target = $region29
    $region28: #{tpu_custom_call.1} parent=1 // pred_region
      %s223 = ssub.s32 256, 256
      %224 = vsyncadd [#allocation4], %s223
      %s225 = sshll.u32 [#allocation8], 4
      %s226 = int_to_ptr.vmem [resolvable:$true] %s225
      %231 = dma.vmem_to_hbm [thread:$0]  %s226, 256, %s3, [#allocation4], 64, 64, 4
    $region29: #{tpu_custom_call.1} parent=1 // pred_fallthru
      _
    // Predicated region
    $region30: #{tpu_custom_call.1} parent=1 // pred_check
      _
    $region31: #{tpu_custom_call.1} parent=1 // pred_check_branch
      %233 = sbr.rel (0) target = $region33
    $region32: #{tpu_custom_call.1} parent=1 // pred_region
      %234 = dma.done [#allocation4], 256
    $region33: #{tpu_custom_call.1} parent=1 // pred_fallthru
      _
    %235 = vsyncpa [#allocation3], 1
    %236 = vsyncpa [#allocation6], 1
    %237 = vsyncpa [#allocation4], 1

</llo_original>
